<compile_context>
chip_gen: v5e
topology: v5e:2x2
jax: 0.10.0
libtpu: 0.0.40
codegen_flags: <defaults>
</compile_context>

<pallas_src>
import functools

import jax
import jax.numpy as jnp
from jax.experimental import pallas as pl
from jax.experimental.pallas import tpu as pltpu


def _patch_merge_kernel(x_ref, o_ref, *, grid_size, out_patch_size, h_per_block, gd):
    """Permutation copy for one block.

    x_ref: (Bb, Hb*G, P*Dw)        lane-dense image rows.
    o_ref: (Bb, Hb*OP, G, G*Dw)    lane-dense output patches.
    """
    # Direct ref-to-ref slice assignments only: this kernel is pure HBM bandwidth,
    # keep the VPU/XLU out of the way. Lane offsets w*gd are multiples of 128 for
    # typical ViT shapes (unmasked stores); if not, stores are masked but correct.
    for bh in range(h_per_block):
        for w in range(out_patch_size):
            o_ref[:, bh * out_patch_size + w, :, :] = x_ref[
                :, pl.ds(bh * grid_size, grid_size), pl.ds(w * gd, gd)]


def my_patch_merging(x, out_patch_num):
    """Pallas implementation of MyPatchMerging.forward.

    x: (B, L, D) array, L must be a perfect square.
    returns: (B, out_patch_num, grid_size**2 * D)
    """
    B, L, D = x.shape
    patch_size = int(round(L ** 0.5))
    assert patch_size * patch_size == L
    out_patch_size = int(round(out_patch_num ** 0.5))
    assert out_patch_size * out_patch_size == out_patch_num
    grid_size = patch_size // out_patch_size
    assert grid_size * out_patch_size == patch_size

    P, OP, G = patch_size, out_patch_size, grid_size
    orig_dtype = x.dtype
    itemsize = jnp.dtype(orig_dtype).itemsize

    # --- sub-32-bit inputs: bitcast adjacent feature groups to uint32 (pure view),
    # restoring clean (8,128) tiles and unmasked stores on all generations.
    pack = 1
    xw = x
    if itemsize < 4:
        k = 4 // itemsize
        if D % k == 0:
            pack = k
            xw = jax.lax.bitcast_convert_type(
                x.reshape(B, L, D // k, k), jnp.uint32)
        # TODO(synk): sub-32-bit inputs whose D is not divisible by 4/itemsize fall
        # back to the native dtype (may relayout / use masked stores on TPU).
    Dw = D // pack
    work_dtype = xw.dtype
    ws = jnp.dtype(work_dtype).itemsize
    gd = G * Dw

    # Free contiguous view: (B, L, Dw) -> (B, P, P*Dw).
    x3 = xw.reshape(B, P, P * Dw)

    # --- batch block: pack several small images per grid step (~2 MiB blocks),
    # but keep >= 2 grid steps along batch when B >= 2 (megacore / v7x two TCs).
    per_image_bytes = P * P * Dw * ws

    def _largest_divisor_leq(n, k):
        k = max(1, min(n, k))
        while n % k:
            k -= 1
        return k

    target_block = 2 << 20
    bb = _largest_divisor_leq(B, max(1, target_block // max(per_image_bytes, 1)))
    if B >= 2 and B // bb < 2:
        bb = _largest_divisor_leq(B, B // 2)

    # --- VMEM budget per generation: 2x double-buffered (in + out) blocks + headroom.
    phys_vmem = 64 << 20                     # conservative default = v7x per-TC VMEM
    try:
        phys_vmem = int(pltpu.get_tpu_info().vmem_capacity_bytes)
    except Exception:
        pass
    usable_vmem = max(phys_vmem - (16 << 20), 8 << 20)   # headroom for Mosaic scratch
    block_budget = max(usable_vmem // 4, 1 << 20)        # per-block budget (2x buffered)

    # --- band block: default whole image (Hb = OP). Split bands only if a single
    # image would blow the VMEM budget, or to keep a >= 2-way grid when B//bb == 1.
    need_hsplit = (B // bb == 1 and OP >= 2)
    hb = OP
    for cand in range(OP, 0, -1):
        if OP % cand:
            continue
        rows = cand * G
        ok_layout = (cand == OP) or (rows % 8 == 0)       # (8,128) sublane rule
        ok_split = (not need_hsplit) or (OP // cand >= 2)
        ok_size = bb * rows * P * Dw * ws <= block_budget
        if ok_layout and ok_split and ok_size:
            hb = cand
            break

    in_block = (bb, hb * G, P * Dw)
    out_block = (bb, hb * OP, G, gd)
    in_block_bytes = bb * hb * G * P * Dw * ws
    out_block_bytes = in_block_bytes
    vmem_limit = int(min(max(2 * (in_block_bytes + out_block_bytes) + (4 << 20),
                             16 << 20),
                         usable_vmem))
    total_bytes = B * L * Dw * ws

    grid = (B // bb, OP // hb)

    out4 = pl.pallas_call(
        functools.partial(_patch_merge_kernel,
                          grid_size=G,
                          out_patch_size=OP,
                          h_per_block=hb,
                          gd=gd),
        out_shape=jax.ShapeDtypeStruct((B, out_patch_num, G, gd), work_dtype),
        grid_spec=pltpu.PrefetchScalarGridSpec(
            num_scalar_prefetch=0,
            grid=grid,
            in_specs=[pl.BlockSpec(in_block, lambda b, h: (b, h, 0))],
            out_specs=pl.BlockSpec(out_block, lambda b, h: (b, h, 0, 0)),
        ),
        compiler_params=pltpu.CompilerParams(
            dimension_semantics=("parallel", "parallel"),
            vmem_limit_bytes=vmem_limit),
        cost_estimate=pl.CostEstimate(
            flops=0, transcendentals=0, bytes_accessed=2 * total_bytes),
    )(x3)

    # Unpack the uint32 view (if any) and flatten (G, G*D) -> G*G*D: both contiguous.
    if pack > 1:
        out5 = jax.lax.bitcast_convert_type(out4, orig_dtype)   # (..., G*Dw, pack)
        return out5.reshape(B, out_patch_num, G * G * D)
    return out4.reshape(B, out_patch_num, G * G * D)


def _reference(x, out_patch_num):
    # Pure-jnp reference mirroring the PyTorch code.
    B, L, D = x.shape
    P = int(round(L ** 0.5))
    OP = int(round(out_patch_num ** 0.5))
    G = P // OP
    x = x.reshape(B, OP, G, OP, G, D)
    x = jnp.einsum('bhpwqd->bhwpqd', x)
    return x.reshape(B, OP * OP, -1)


if __name__ == "__main__":
    key = jax.random.PRNGKey(0)
    k1, k2, k3 = jax.random.split(key, 3)

    # (key, B, L, D, out_patch_num, dtype):
    #  - small f32 case (B=2)          -> Bb=1, whole-image blocks, 2-way grid
    #  - larger batch f32 case (B=8)   -> exercises image batching (Bb>1)
    #  - bf16 case                     -> exercises the uint32 packing path
    tests = [
        (k1, 2, 256, 32, 4, jnp.float32),
        (k2, 8, 256, 32, 4, jnp.float32),
        (k3, 2, 256, 32, 4, jnp.bfloat16),
    ]

    for k, B, L, D, opn, dt in tests:
        x = jax.random.normal(k, (B, L, D), dtype=jnp.float32).astype(dt)
        y = jax.block_until_ready(my_patch_merging(x, opn))
        y_ref = _reference(x, opn)
        G = int(round(L ** 0.5)) // int(round(opn ** 0.5))
        assert y.shape == (B, opn, G * G * D), (y.shape, dt)
        assert y.dtype == x.dtype, (y.dtype, x.dtype)
        assert jnp.array_equal(y, y_ref), f"mismatch for dtype={dt}, B={B}"

    print("KERNEL_OK")
</pallas_src>

<mosaic_0001>
module attributes {stable_mosaic.version = 11 : i64} {
  func.func @_patch_merge_kernel(%arg0: i32, %arg1: i32, %arg2: memref<1x16x512xf32, #tpu.memory_space<vmem>>, %arg3: memref<1x4x8x256xf32, #tpu.memory_space<vmem>>) attributes {dimension_semantics = [#tpu.dimension_semantics<parallel>, #tpu.dimension_semantics<parallel>], iteration_bounds = array<i64: 2, 1>, scalar_prefetch = 0 : i64, scratch_operands = 0 : i64, tpu.core_type = #tpu.core_type<tc>, window_params = [{transform_indices = @transform_0, window_bounds = array<i64: 1, 16, 512>}, {transform_indices = @transform_1, window_bounds = array<i64: 1, 4, 8, 256>}]} {
    %c0 = arith.constant 0 : index
    %c0_0 = arith.constant 0 : index
    %c0_1 = arith.constant 0 : index
    %0 = vector.load %arg2[%c0, %c0_0, %c0_1] : memref<1x16x512xf32, #tpu.memory_space<vmem>>, vector<1x8x256xf32>
    %c0_2 = arith.constant 0 : index
    %c0_3 = arith.constant 0 : index
    %c0_4 = arith.constant 0 : index
    %c0_5 = arith.constant 0 : index
    %1 = vector.load %arg3[%c0_2, %c0_3, %c0_4, %c0_5] : memref<1x4x8x256xf32, #tpu.memory_space<vmem>>, vector<1x1x8x256xf32>
    %2 = vector.shape_cast %1 : vector<1x1x8x256xf32> to vector<1x8x256xf32>
    %3 = vector.shape_cast %0 : vector<1x8x256xf32> to vector<1x1x8x256xf32>
    tpu.vector_store %arg3[%c0_2, %c0_3, %c0_4, %c0_5], %3 {strides = array<i32>} : memref<1x4x8x256xf32, #tpu.memory_space<vmem>>, vector<1x1x8x256xf32>,
    %c0_6 = arith.constant 0 : index
    %c0_7 = arith.constant 0 : index
    %c256 = arith.constant 256 : index
    %4 = vector.load %arg2[%c0_6, %c0_7, %c256] : memref<1x16x512xf32, #tpu.memory_space<vmem>>, vector<1x8x256xf32>
    %c0_8 = arith.constant 0 : index
    %c1 = arith.constant 1 : index
    %c0_9 = arith.constant 0 : index
    %c0_10 = arith.constant 0 : index
    %5 = vector.load %arg3[%c0_8, %c1, %c0_9, %c0_10] : memref<1x4x8x256xf32, #tpu.memory_space<vmem>>, vector<1x1x8x256xf32>
    %6 = vector.shape_cast %5 : vector<1x1x8x256xf32> to vector<1x8x256xf32>
    %7 = vector.shape_cast %4 : vector<1x8x256xf32> to vector<1x1x8x256xf32>
    tpu.vector_store %arg3[%c0_8, %c1, %c0_9, %c0_10], %7 {strides = array<i32>} : memref<1x4x8x256xf32, #tpu.memory_space<vmem>>, vector<1x1x8x256xf32>,
    %c0_11 = arith.constant 0 : index
    %c8 = arith.constant 8 : index
    %c0_12 = arith.constant 0 : index
    %8 = vector.load %arg2[%c0_11, %c8, %c0_12] : memref<1x16x512xf32, #tpu.memory_space<vmem>>, vector<1x8x256xf32>
    %c0_13 = arith.constant 0 : index
    %c2 = arith.constant 2 : index
    %c0_14 = arith.constant 0 : index
    %c0_15 = arith.constant 0 : index
    %9 = vector.load %arg3[%c0_13, %c2, %c0_14, %c0_15] : memref<1x4x8x256xf32, #tpu.memory_space<vmem>>, vector<1x1x8x256xf32>
    %10 = vector.shape_cast %9 : vector<1x1x8x256xf32> to vector<1x8x256xf32>
    %11 = vector.shape_cast %8 : vector<1x8x256xf32> to vector<1x1x8x256xf32>
    tpu.vector_store %arg3[%c0_13, %c2, %c0_14, %c0_15], %11 {strides = array<i32>} : memref<1x4x8x256xf32, #tpu.memory_space<vmem>>, vector<1x1x8x256xf32>,
    %c0_16 = arith.constant 0 : index
    %c8_17 = arith.constant 8 : index
    %c256_18 = arith.constant 256 : index
    %12 = vector.load %arg2[%c0_16, %c8_17, %c256_18] : memref<1x16x512xf32, #tpu.memory_space<vmem>>, vector<1x8x256xf32>
    %c0_19 = arith.constant 0 : index
    %c3 = arith.constant 3 : index
    %c0_20 = arith.constant 0 : index
    %c0_21 = arith.constant 0 : index
    %13 = vector.load %arg3[%c0_19, %c3, %c0_20, %c0_21] : memref<1x4x8x256xf32, #tpu.memory_space<vmem>>, vector<1x1x8x256xf32>
    %14 = vector.shape_cast %13 : vector<1x1x8x256xf32> to vector<1x8x256xf32>
    %15 = vector.shape_cast %12 : vector<1x8x256xf32> to vector<1x1x8x256xf32>
    tpu.vector_store %arg3[%c0_19, %c3, %c0_20, %c0_21], %15 {strides = array<i32>} : memref<1x4x8x256xf32, #tpu.memory_space<vmem>>, vector<1x1x8x256xf32>,
    return
  }
  func.func @transform_0(%arg0: i32, %arg1: i32) -> (i32, i32, i32) {
    %c0_i32 = arith.constant 0 : i32
    %c0_i32_0 = arith.constant 0 : i32
    return %arg0, %arg1, %c0_i32 : i32, i32, i32
  }
  func.func @transform_1(%arg0: i32, %arg1: i32) -> (i32, i32, i32, i32) {
    %c0_i32 = arith.constant 0 : i32
    %c0_i32_0 = arith.constant 0 : i32
    %c0_i32_1 = arith.constant 0 : i32
    return %arg0, %arg1, %c0_i32, %c0_i32_0 : i32, i32, i32, i32
  }
}

</mosaic_0001>

<llo_original>
// kernel: tpu_custom_call.1
$region0: #{tpu_custom_call.1}
  #allocation0 [shape = 'u32[]', space=smem, size = 0x4, offset = 0x4, fixed_abs, tag = 'smem constant byte address 0x4 - core index']
  #allocation1 [shape = 'u32[72,128]{1,0:T(1,128)}', space=vmem, size = 0x9000, scoped, tag = 'internal scratch']
  %s0 = inlined_call_operand.hbm [shape: f32[2,16,512], index: 0, kind: input, shape index: {}]
  %s1 = inlined_call_operand.hbm [shape: f32[2,4,8,256], index: 1, kind: output, shape index: {}]
  %s2 = sld [smem:[#allocation0]]
  $region41: #{tpu_custom_call.1} parent=0
    _
  %s4 = ssub.s32 1, %s2
  %s5 = scalar_select 0, %s4, %s2
  $region1: #{tpu_custom_call.1} parent=0
    #allocation2 [shape = 'u8[65536]{0}', space=vmem, size = 0x10000, scoped, tag = 'input window, operand 0']
    #allocation3 [shape = 's32[2]{0}', space=sflag, size = 0x8, scoped, tag = 'scoped memory for tpu_custom_call.1']
    #allocation4 [shape = 's32[2]{0}', space=sflag, size = 0x8, scoped, tag = 'scoped memory for tpu_custom_call.1']
    #allocation5 [shape = 'u8[65536]{0}', space=vmem, size = 0x10000, scoped, tag = 'output window, operand 0']
    %6 = vsyncpa [#allocation3], 0
    %s7 = scalar_lea.sflag [#allocation3], 1
    %8 = vsyncpa %s7, 0
    %9 = vsyncpa [#allocation4], 0
    %s10 = scalar_lea.sflag [#allocation4], 1
    %11 = vsyncpa %s10, 0
    loop: start=0, step=1, limit=4
    $region2: #{tpu_custom_call.1} parent=1 // loop_pre_header
      _
    $region3: #{tpu_custom_call.1} parent=1 // loop_header
      %s13 = sphi 0, %s17
      %p14 = scmp.ge.s32.totalorder %s13, 4
      %s20 = sphi 0, %s32
      %s21 = sphi 0, %s28
      %s22 = sphi 0, %s20
      %s23 = sphi 0, %s21
      %s24 = sphi 0, %s22
      %s25 = sphi 0, %s23
      %s37 = sphi 0, %s39
      %s40 = sphi 0, %s37
      %s41 = sphi 0, %s40
      %s57 = sphi 0, %s41
      %s65 = sphi 0, %s67
      %s68 = sphi 0, %s65
      %s69 = sphi 0, %s68
      %s85 = sphi 0, %s69
    $region4: #{tpu_custom_call.1} parent=1 // loop_header_branch
      %16 = sbr.rel (%p14) target = $region8
    $region5: #{tpu_custom_call.1} parent=1 // loop_body
      %s18 = ssub.s32 %s13, 1
      %s19 = ssub.s32 %s13, 2
      %s26 = sadd.s32 1, %s21
      %p27 = scmp.ge.s32.totalorder %s26, 1
      %s28 = scalar_select %p27, 0, %s26
      %s29 = sadd.s32 1, %s20
      %s30 = scalar_select %p27, %s29, %s20
      %p31 = scmp.ge.s32.totalorder %s30, 2
      %s32 = scalar_select %p31, 0, %s30
      %s33 = ssub.s32 %s20, %s32
      %s34 = ssub.s32 %s21, %s28
      %s35 = sor.u32 %s33, %s34
      %p36 = scmp.eq.s32.totalorder %s35, 0
      %s38 = sadd.s32 %s37, 1
      %s39 = scalar_select %p36, %s37, %s38
      %p42 = pneg %p36
      %p43 = scmp.eq.s32.totalorder %s13, 1
      %p44 = por %p42, %p43
      %p45 = scmp.ne.s32.totalorder %s37, %s40
      %p46 = scmp.eq.s32.totalorder %s13, 0
      %p47 = por %p45, %p46
      %p48 = scmp.ne.s32.totalorder %s37, %s40
      %p49 = scmp.eq.s32.totalorder %s18, 1
      %p50 = por %p48, %p49
      %p51 = scmp.ne.s32.totalorder %s40, %s41
      %p52 = scmp.eq.s32.totalorder %s18, 0
      %p53 = por %p51, %p52
      %p54 = scmp.ne.s32.totalorder %s40, %s41
      %p55 = scmp.eq.s32.totalorder %s19, 1
      %p56 = por %p54, %p55
      %p58 = scmp.ne.s32.totalorder %s41, %s57
      %p59 = scmp.eq.s32.totalorder %s19, 0
      %p60 = por %p58, %p59
      %s61 = ssub.s32 %s20, %s32
      %s62 = ssub.s32 %s21, %s28
      %s63 = sor.u32 %s61, %s62
      %p64 = scmp.eq.s32.totalorder %s63, 0
      %s66 = sadd.s32 %s65, 1
      %s67 = scalar_select %p64, %s65, %s66
      %p70 = pneg %p64
      %p71 = scmp.eq.s32.totalorder %s13, 1
      %p72 = por %p70, %p71
      %p73 = scmp.ne.s32.totalorder %s65, %s68
      %p74 = scmp.eq.s32.totalorder %s13, 0
      %p75 = por %p73, %p74
      %p76 = scmp.ne.s32.totalorder %s65, %s68
      %p77 = scmp.eq.s32.totalorder %s18, 1
      %p78 = por %p76, %p77
      %p79 = scmp.ne.s32.totalorder %s68, %s69
      %p80 = scmp.eq.s32.totalorder %s18, 0
      %p81 = por %p79, %p80
      %p82 = scmp.ne.s32.totalorder %s68, %s69
      %p83 = scmp.eq.s32.totalorder %s19, 1
      %p84 = por %p82, %p83
      %p86 = scmp.ne.s32.totalorder %s69, %s85
      %p87 = scmp.eq.s32.totalorder %s19, 0
      %p88 = por %p86, %p87
      %p89 = scmp.le.s32.totalorder 1, %s13
      %p90 = scmp.lt.s32.totalorder %s13, 3
      %p91 = pnand %p89, %p90
      %p92 = pneg %p91
      // Predicated region
      $region9: #{tpu_custom_call.1} parent=5 // pred_check
        _
      $region10: #{tpu_custom_call.1} parent=5 // pred_check_branch
        %94 = sbr.rel (%p91) target = $region12
      $region11: #{tpu_custom_call.1} parent=5 // pred_region
        %s95 = ssub.s32 %s13, 1
      $region12: #{tpu_custom_call.1} parent=5 // pred_fallthru
        _
      %p96 = scmp.lt.s32.totalorder %s13, 2
      // Predicated region
      $region13: #{tpu_custom_call.1} parent=5 // pred_check
        %p97 = pneg %p96
      $region14: #{tpu_custom_call.1} parent=5 // pred_check_branch
        %99 = sbr.rel (%p97) target = $region16
      $region15: #{tpu_custom_call.1} parent=5 // pred_region
        // Predicated region
        $region17: #{tpu_custom_call.1} parent=15 // pred_check
          %p100 = pneg %p47
        $region18: #{tpu_custom_call.1} parent=15 // pred_check_branch
          %102 = sbr.rel (%p100) target = $region20
        $region19: #{tpu_custom_call.1} parent=15 // pred_region
          %s103 = sand.u32 %s37, 1
          %s104 = scalar_lea.sflag [#allocation3], %s103
          %s105 = sand.u32 %s37, 1
          %s106 = smul.addr %s105, 64
          %s107 = scalar_lea.vmem [#allocation2], %s106
          %s108 = smul.u32 2, %s21
          %110 = vsyncadd %s104, 0
          %s111 = smul.addr %s108, 4
          %s112 = smul.addr %s20, 8
          %s113 = sadd.s32 %s111, %s112
          %s114 = smul.addr %s113, 8
          %s115 = scalar_lea.hbm %s0, %s114
          %s116 = sshll.u32 %s115, 4
          %s117 = int_to_ptr.hbm [resolvable:$true] %s116
          %s118 = sshll.u32 %s107, 4
          %s119 = int_to_ptr.vmem [resolvable:$true] %s118
          %124 = dma.hbm_to_vmem [thread:$0]  %s117, 1024, %s119, %s104, 512, 512, 32
        $region20: #{tpu_custom_call.1} parent=15 // pred_fallthru
          _
      $region16: #{tpu_custom_call.1} parent=5 // pred_fallthru
        _
      %p125 = scmp.le.s32.totalorder 1, %s13
      %p126 = scmp.lt.s32.totalorder %s13, 3
      %p127 = pnand %p125, %p126
      %p128 = pneg %p127
      // Predicated region
      $region21: #{tpu_custom_call.1} parent=5 // pred_check
        _
      $region22: #{tpu_custom_call.1} parent=5 // pred_check_branch
        %130 = sbr.rel (%p127) target = $region24
      $region23: #{tpu_custom_call.1} parent=5 // pred_region
        %s131 = ssub.s32 %s13, 1
        %s132 = sand.u32 %s40, 1
        %s133 = scalar_lea.sflag [#allocation3], %s132
        %s134 = sand.u32 %s40, 1
        %s135 = smul.addr %s134, 64
        %s136 = scalar_lea.vmem [#allocation2], %s135
        // Predicated region
        $region25: #{tpu_custom_call.1} parent=23 // pred_check
          %p137 = pneg %p53
        $region26: #{tpu_custom_call.1} parent=23 // pred_check_branch
          %139 = sbr.rel (%p137) target = $region28
        $region27: #{tpu_custom_call.1} parent=23 // pred_region
          %141 = dma.done %s133, 1024
        $region28: #{tpu_custom_call.1} parent=23 // pred_fallthru
          _
        %s142 = sand.u32 %s40, 1
        %s143 = scalar_lea.sflag [#allocation3], %s142
        %s144 = sand.u32 %s40, 1
        %s145 = smul.addr %s144, 64
        %s146 = scalar_lea.vmem [#allocation2], %s145
        %p147 = pneg %p53
        %p148 = pneg %p50
        %p149 = pneg %p81
        %p150 = pneg %p78
        %s151 = sand.u32 %s68, 1
        %s152 = scalar_lea.sflag [#allocation4], %s151
        %s153 = sand.u32 %s68, 1
        %s154 = smul.addr %s153, 64
        %s155 = scalar_lea.vmem [#allocation5], %s154
        %s156 = smul.u32 2, %s23
        %s157 = smul.u32 4, %s23
        %v158 = vld [vmem:[%s136] sm:$0xff]
        %v159 = vld [vmem:[%s136 + $0x8] sm:$0xff]
        %160 = vst [vmem:[%s155] sm:$0xff] %v158
        %161 = vst [vmem:[%s155 + $0x8] sm:$0xff] %v159
        %v162 = vld [vmem:[%s136 + $0x10] sm:$0xff]
        %v163 = vld [vmem:[%s136 + $0x18] sm:$0xff]
        %s164 = scalar_lea.vmem %s155, 16 [#allocation5]
        %165 = vst [vmem:[%s164] sm:$0xff] %v162
        %166 = vst [vmem:[%s164 + $0x8] sm:$0xff] %v163
        %v167 = vld [vmem:[%s136 + $0x20] sm:$0xff]
        %v168 = vld [vmem:[%s136 + $0x28] sm:$0xff]
        %s169 = scalar_lea.vmem %s155, 32 [#allocation5]
        %170 = vst [vmem:[%s169] sm:$0xff] %v167
        %171 = vst [vmem:[%s169 + $0x8] sm:$0xff] %v168
        %v172 = vld [vmem:[%s136 + $0x30] sm:$0xff]
        %v173 = vld [vmem:[%s136 + $0x38] sm:$0xff]
        %s174 = scalar_lea.vmem %s155, 48 [#allocation5]
        %175 = vst [vmem:[%s174] sm:$0xff] %v172
        %176 = vst [vmem:[%s174 + $0x8] sm:$0xff] %v173
        %s177 = sand.u32 %s68, 1
        %s178 = scalar_lea.sflag [#allocation4], %s177
        %s179 = sand.u32 %s68, 1
        %s180 = smul.addr %s179, 64
        %s181 = scalar_lea.vmem [#allocation5], %s180
        // Predicated region
        $region29: #{tpu_custom_call.1} parent=23 // pred_check
          %p182 = pneg %p78
        $region30: #{tpu_custom_call.1} parent=23 // pred_check_branch
          %184 = sbr.rel (%p182) target = $region32
        $region31: #{tpu_custom_call.1} parent=23 // pred_region
          %s185 = smul.u32 4, %s23
          %187 = vsyncadd %s178, 0
          %s188 = smul.addr %s185, 2
          %s189 = smul.addr %s22, 8
          %s190 = sadd.s32 %s188, %s189
          %s191 = smul.addr %s190, 8
          %s192 = scalar_lea.hbm %s1, %s191
          %s193 = sshll.u32 %s181, 4
          %s194 = int_to_ptr.vmem [resolvable:$true] %s193
          %s195 = sshll.u32 %s192, 4
          %s196 = int_to_ptr.hbm [resolvable:$true] %s195
          %201 = dma.vmem_to_hbm [thread:$0]  %s194, 1024, %s196, %s178, 256, 256, 16
        $region32: #{tpu_custom_call.1} parent=23 // pred_fallthru
          _
      $region24: #{tpu_custom_call.1} parent=5 // pred_fallthru
        _
      %p202 = scmp.le.s32.totalorder 2, %s13
      // Predicated region
      $region33: #{tpu_custom_call.1} parent=5 // pred_check
        %p203 = pneg %p202
      $region34: #{tpu_custom_call.1} parent=5 // pred_check_branch
        %205 = sbr.rel (%p203) target = $region36
      $region35: #{tpu_custom_call.1} parent=5 // pred_region
        %s206 = ssub.s32 %s13, 2
        // Predicated region
        $region37: #{tpu_custom_call.1} parent=35 // pred_check
          %p207 = pneg %p84
        $region38: #{tpu_custom_call.1} parent=35 // pred_check_branch
          %209 = sbr.rel (%p207) target = $region40
        $region39: #{tpu_custom_call.1} parent=35 // pred_region
          %s210 = sand.u32 %s69, 1
          %s211 = scalar_lea.sflag [#allocation4], %s210
          %s212 = sand.u32 %s69, 1
          %s213 = smul.addr %s212, 64
          %s214 = scalar_lea.vmem [#allocation5], %s213
          %216 = dma.done %s211, 1024
        $region40: #{tpu_custom_call.1} parent=35 // pred_fallthru
          _
      $region36: #{tpu_custom_call.1} parent=5 // pred_fallthru
        _
    $region6: #{tpu_custom_call.1} parent=1 // loop_footer
      %s17 = sadd.s32 1, %s13
    $region7: #{tpu_custom_call.1} parent=1 // loop_footer_branch
      %12 = sbr.rel target = $region3
    $region8: #{tpu_custom_call.1} parent=1 // loop_exit
      _
    %217 = vsyncpa [#allocation3], 1
    %s218 = scalar_lea.sflag [#allocation3], 1
    %219 = vsyncpa %s218, 1
    %220 = vsyncpa [#allocation4], 1
    %s221 = scalar_lea.sflag [#allocation4], 1
    %222 = vsyncpa %s221, 1

</llo_original>
